<compile_context>
chip_gen: v7x
topology: tpu7x:2x2x1
jax: 0.10.0
libtpu: 0.0.40
codegen_flags: <defaults>
</compile_context>

<pallas_src>
import jax
import jax.numpy as jnp
from jax.experimental import pallas as pl
from jax.experimental.pallas import tpu as pltpu


_VMEM_TILE_BUDGET_BYTES = 12 * 1024 * 1024   # staged path: double-buffered tiles
_VMEM_LIMIT_BYTES = 32 * 1024 * 1024         # raises v5e's 16 MiB scoped default; safe on v6e/v7x
_MIN_DMA_CHUNK_BYTES = 512                   # below this, strided half-row HBM reads waste BW


def _sublane_multiple(dtype) -> int:
    """Rows per packed vreg sublane group: 8 for 32-bit, 16 for bf16, 32 for int8/fp8."""
    itemsize = jnp.dtype(dtype).itemsize
    return {4: 8, 2: 16, 1: 32}.get(itemsize, 8)


def _round_up(x: int, m: int) -> int:
    return ((x + m - 1) // m) * m


def _num_tensorcores() -> int:
    """Best-effort: v7x has 2 TensorCores per chip; v5e/v6e have 1."""
    try:
        kind = jax.devices()[0].device_kind.lower()
    except Exception:
        return 1
    return 2 if "v7" in kind else 1


# ---------------------------------------------------------------------------
# Fast path: direct HBM -> HBM DMAs (no VMEM staging, no grid).
# ---------------------------------------------------------------------------
def _split_direct_kernel(x_hbm, pi_hbm, vf_hbm, sem):
    half = pi_hbm.shape[-1]
    cp_pi = pltpu.make_async_copy(x_hbm.at[:, pl.ds(0, half)], pi_hbm, sem.at[0])
    cp_vf = pltpu.make_async_copy(x_hbm.at[:, pl.ds(half, half)], vf_hbm, sem.at[1])
    cp_pi.start()
    cp_vf.start()
    cp_pi.wait()
    cp_vf.wait()


def _split_direct(features: jax.Array, half: int):
    B, F = features.shape
    itemsize = jnp.dtype(features.dtype).itemsize
    out_shape = (
        jax.ShapeDtypeStruct((B, half), features.dtype),
        jax.ShapeDtypeStruct((B, half), features.dtype),
    )
    return pl.pallas_call(
        _split_direct_kernel,
        out_shape=out_shape,
        in_specs=[pl.BlockSpec(memory_space=pl.ANY)],
        out_specs=(
            pl.BlockSpec(memory_space=pl.ANY),
            pl.BlockSpec(memory_space=pl.ANY),
        ),
        scratch_shapes=[pltpu.SemaphoreType.DMA((2,))],
        cost_estimate=pl.CostEstimate(
            flops=0, transcendentals=0, bytes_accessed=2 * B * F * itemsize
        ),
    )(features)


# ---------------------------------------------------------------------------
# Staged path: contiguous full-width input tile, split in-vreg, contiguous outputs.
# ---------------------------------------------------------------------------
def _split_staged_kernel(x_ref, pi_ref, vf_ref):
    # Write straight from sliced ref views (no full-tile temp): lower vreg pressure
    # and lets Mosaic strip-mine aligned loads per destination.
    half = pi_ref.shape[-1]
    pi_ref[...] = x_ref[:, :half]
    vf_ref[...] = x_ref[:, half:]


def _pick_batch_tile(B: int, F: int, dtype, num_tensorcores: int) -> int:
    """Largest dtype-aligned batch tile under the VMEM budget.

    Per grid step (double-buffered): 2*(in + out) bytes = 2*(tb*F + 2*tb*(F/2))*itemsize
                                   = 4*tb*F*itemsize.
    """
    itemsize = jnp.dtype(dtype).itemsize
    sub = _sublane_multiple(dtype)
    max_tb = max(sub, (_VMEM_TILE_BUDGET_BYTES // (4 * F * itemsize)) // sub * sub)
    tb = min(max_tb, _round_up(B, sub))
    if num_tensorcores >= 2 and B >= 2 * sub:
        # v7x only: make the number of grid steps even (and >= 2) so both TensorCores
        # get equal work under dimension_semantics=("parallel",).
        steps = max(pl.cdiv(B, tb), 2)
        if steps % 2:
            steps += 1
        tb = min(tb, _round_up(pl.cdiv(B, steps), sub))
    if tb >= B:
        tb = B  # single full block; block dim == full array dim is always legal
    return tb


def _split_staged(features: jax.Array, half: int):
    B, F = features.shape
    itemsize = jnp.dtype(features.dtype).itemsize
    tb = _pick_batch_tile(B, F, features.dtype, _num_tensorcores())
    grid = (pl.cdiv(B, tb),)  # partial tail block is masked by Pallas (OOB writes dropped)
    out_shape = (
        jax.ShapeDtypeStruct((B, half), features.dtype),
        jax.ShapeDtypeStruct((B, half), features.dtype),
    )
    return pl.pallas_call(
        _split_staged_kernel,
        out_shape=out_shape,
        grid=grid,
        in_specs=[pl.BlockSpec((tb, F), lambda i: (i, 0))],
        out_specs=(
            pl.BlockSpec((tb, half), lambda i: (i, 0)),
            pl.BlockSpec((tb, half), lambda i: (i, 0)),
        ),
        compiler_params=pltpu.CompilerParams(
            dimension_semantics=("parallel",),
            vmem_limit_bytes=_VMEM_LIMIT_BYTES,
        ),
        cost_estimate=pl.CostEstimate(
            flops=0, transcendentals=0, bytes_accessed=2 * B * F * itemsize
        ),
    )(features)


# ---------------------------------------------------------------------------
# Public forward
# ---------------------------------------------------------------------------
def split_dreamer_cnn_forward(features: jax.Array, latent_dim_pi: int, latent_dim_vf: int):
    """Pallas implementation of SplitDreamerCnn.forward.

    features: [B, F] with F == latent_dim_pi + latent_dim_vf (== 2 * latent_dim_pi).
    Returns (pi_latent [B, latent_dim_pi], vf_latent [B, latent_dim_vf]).
    """
    B, F = features.shape
    assert F == latent_dim_pi + latent_dim_vf
    assert latent_dim_pi == latent_dim_vf == F // 2
    half = F // 2
    itemsize = jnp.dtype(features.dtype).itemsize

    # Direct HBM->HBM DMAs when the split is lane-aligned and half-rows are DMA-efficient.
    if half % 128 == 0 and half * itemsize >= _MIN_DMA_CHUNK_BYTES:
        try:
            return _split_direct(features, half)
        except Exception:
            # Defensive fallback if this Mosaic build rejects local HBM->HBM sliced DMAs.
            pass
    # Otherwise: contiguous staged copy (also covers the module default half=300).
    return _split_staged(features, half)


class SplitDreamerCnnPallas:
    """Mirror of the PyTorch module API (no parameters to initialize)."""

    def __init__(self, feature_dim: int, last_layer_dim_pi: int = 300, last_layer_dim_vf: int = 300):
        assert feature_dim / 2 == last_layer_dim_pi
        assert feature_dim / 2 == last_layer_dim_vf
        self.feature_dim = feature_dim
        self.latent_dim_pi = last_layer_dim_pi
        self.latent_dim_vf = last_layer_dim_vf

    def forward(self, features):
        return split_dreamer_cnn_forward(features, self.latent_dim_pi, self.latent_dim_vf)

    def forward_actor(self, features):
        return self.forward(features)[0]

    def forward_critic(self, features):
        return self.forward(features)[1]


if __name__ == "__main__":
    key = jax.random.PRNGKey(0)

    def _check(B: int, feature_dim: int, dtype):
        half = feature_dim // 2
        x = jax.random.normal(key, (B, feature_dim), dtype=jnp.float32).astype(dtype)
        model = SplitDreamerCnnPallas(feature_dim, half, half)
        pi, vf = model.forward(x)
        jax.block_until_ready((pi, vf))
        assert pi.shape == (B, half) and vf.shape == (B, half)
        assert jnp.array_equal(pi, x[:, :half])
        assert jnp.array_equal(vf, x[:, half:])

    # Module default (latent 300): non-lane-aligned split -> staged path.
    _check(B=8, feature_dim=600, dtype=jnp.float32)
    # Lane-aligned split with >= 512 B half-rows: direct HBM->HBM DMA path.
    _check(B=16, feature_dim=256, dtype=jnp.float32)
    # Batch smaller than a sublane group and non-divisible: single-block staged path.
    _check(B=5, feature_dim=600, dtype=jnp.float32)
    # Lane-aligned but sub-512 B half-rows (bf16): contiguous staged path.
    _check(B=12, feature_dim=256, dtype=jnp.bfloat16)

    print("KERNEL_OK")
</pallas_src>

<mosaic_0001>
module attributes {stable_mosaic.version = 11 : i64} {
  func.func @_split_staged_kernel(%arg0: i32, %arg1: memref<8x600xf32, #tpu.memory_space<vmem>>, %arg2: memref<8x300xf32, #tpu.memory_space<vmem>>, %arg3: memref<8x300xf32, #tpu.memory_space<vmem>>) attributes {dimension_semantics = [#tpu.dimension_semantics<parallel>], iteration_bounds = array<i64: 1>, scalar_prefetch = 0 : i64, scratch_operands = 0 : i64, tpu.core_type = #tpu.core_type<tc>, window_params = [{transform_indices = @transform_0, window_bounds = array<i64: 8, 600>}, {transform_indices = @transform_1, window_bounds = array<i64: 8, 300>}, {transform_indices = @transform_2, window_bounds = array<i64: 8, 300>}]} {
    %c0 = arith.constant 0 : index
    %c0_0 = arith.constant 0 : index
    %0 = vector.load %arg1[%c0, %c0_0] : memref<8x600xf32, #tpu.memory_space<vmem>>, vector<8x300xf32>
    %c0_1 = arith.constant 0 : index
    %c0_2 = arith.constant 0 : index
    %1 = vector.load %arg2[%c0_1, %c0_2] : memref<8x300xf32, #tpu.memory_space<vmem>>, vector<8x300xf32>
    tpu.vector_store %arg2[%c0_1, %c0_2], %0 {strides = array<i32>} : memref<8x300xf32, #tpu.memory_space<vmem>>, vector<8x300xf32>,
    %c0_3 = arith.constant 0 : index
    %c300 = arith.constant 300 : index
    %2 = vector.load %arg1[%c0_3, %c300] : memref<8x600xf32, #tpu.memory_space<vmem>>, vector<8x300xf32>
    %c0_4 = arith.constant 0 : index
    %c0_5 = arith.constant 0 : index
    %3 = vector.load %arg3[%c0_4, %c0_5] : memref<8x300xf32, #tpu.memory_space<vmem>>, vector<8x300xf32>
    tpu.vector_store %arg3[%c0_4, %c0_5], %2 {strides = array<i32>} : memref<8x300xf32, #tpu.memory_space<vmem>>, vector<8x300xf32>,
    return
  }
  func.func @transform_0(%arg0: i32) -> (i32, i32) {
    %c0_i32 = arith.constant 0 : i32
    %c0_i32_0 = arith.constant 0 : i32
    return %arg0, %c0_i32 : i32, i32
  }
  func.func @transform_1(%arg0: i32) -> (i32, i32) {
    %c0_i32 = arith.constant 0 : i32
    %c0_i32_0 = arith.constant 0 : i32
    return %arg0, %c0_i32 : i32, i32
  }
  func.func @transform_2(%arg0: i32) -> (i32, i32) {
    %c0_i32 = arith.constant 0 : i32
    %c0_i32_0 = arith.constant 0 : i32
    return %arg0, %c0_i32 : i32, i32
  }
}

</mosaic_0001>

<llo_original>
// kernel: tpu_custom_call.1
$region0: #{tpu_custom_call.1}
  #allocation0 [shape = 'u32[]', space=smem, size = 0x4, offset = 0x4, fixed_abs, tag = 'smem constant byte address 0x4 - core index']
  #allocation1 [shape = 'u32[144,128]{1,0:T(1,128)}', space=vmem, size = 0x12000, scoped, tag = 'internal scratch']
  %s0 = inlined_call_operand.hbm [shape: f32[8,600], index: 0, kind: input, shape index: {}]
  %s1 = inlined_call_operand.hbm [shape: f32[8,300], index: 1, kind: output, shape index: {0}]
  %s2 = inlined_call_operand.hbm [shape: f32[8,300], index: 2, kind: output, shape index: {1}]
  %3 = xla_tuple %s1, %s2
  %s4 = sld [smem:[#allocation0]]
  $region26: #{tpu_custom_call.1} parent=0
    _
  %s6 = ssub.s32 1, %s4
  %s7 = scalar_select 0, %s6, %s4
  $region1: #{tpu_custom_call.1} parent=0
    #allocation2 [shape = 'u8[20480]{0}', space=vmem, size = 0x5000, scoped, tag = 'input window, operand 0, single buffered']
    #allocation3 [shape = 's32[1]{0}', space=sflag, size = 0x4, scoped, tag = 'scoped memory for tpu_custom_call.1']
    #allocation4 [shape = 's32[1]{0}', space=sflag, size = 0x4, scoped, tag = 'scoped memory for tpu_custom_call.1']
    #allocation5 [shape = 'u8[12288]{0}', space=vmem, size = 0x3000, scoped, tag = 'output window, operand 0, single buffered']
    #allocation6 [shape = 'u8[12288]{0}', space=vmem, size = 0x3000, scoped, tag = 'output window, operand 1, single buffered']
    #allocation7 [shape = 's32[1]{0}', space=sflag, size = 0x4, scoped, tag = 'scoped memory for tpu_custom_call.1']
    %8 = vsyncpa [#allocation3], 0
    %9 = vsyncpa [#allocation4], 0
    %10 = vsyncpa [#allocation7], 0
    // Predicated region
    $region2: #{tpu_custom_call.1} parent=1 // pred_check
      _
    $region3: #{tpu_custom_call.1} parent=1 // pred_check_branch
      %12 = sbr.rel (0) target = $region5
    $region4: #{tpu_custom_call.1} parent=1 // pred_region
      %s14 = ssub.s32 640, 640
      %15 = vsyncadd [#allocation3], %s14
      %s17 = sshll.u32 [#allocation2], 4
      %s18 = int_to_ptr.vmem [resolvable:$true] %s17
      %20 = dma.hbm_to_vmem [thread:$0]  %s0, 640, %s18, [#allocation3]
    $region5: #{tpu_custom_call.1} parent=1 // pred_fallthru
      _
    // Predicated region
    $region6: #{tpu_custom_call.1} parent=1 // pred_check
      _
    $region7: #{tpu_custom_call.1} parent=1 // pred_check_branch
      %22 = sbr.rel (0) target = $region9
    $region8: #{tpu_custom_call.1} parent=1 // pred_region
      %23 = dma.done [#allocation3], 640
    $region9: #{tpu_custom_call.1} parent=1 // pred_fallthru
      _
    %v24 = vld [vmem:[#allocation2] sm:$0xff]
    %v25 = vld [vmem:[#allocation2 + $0x8] sm:$0xff]
    %v26 = vld [vmem:[#allocation2 + $0x10] sm:$0xff]
    %27 = vst [vmem:[#allocation5] sm:$0xff] %v24
    %28 = vst [vmem:[#allocation5 + $0x8] sm:$0xff] %v25
    %vm29 = vcmask 359424
    %30 = vst.msk [vmem:[#allocation5 + $0x10] sm:$0xff] %vm29, %v26
    %v31 = vld [vmem:[#allocation2 + $0x10] sm:$0xff]
    %v32 = vld [vmem:[#allocation2 + $0x18] sm:$0xff]
    %v33 = vld [vmem:[#allocation2 + $0x20] sm:$0xff]
    %37 = vrot.lane.b32.xlu0 %v31, 84
    %v38 = vpop.permute.xlu0 %37
    %39 = vrot.lane.b32.xlu0 %v32, 84
    %v40 = vpop.permute.xlu0 %39
    %41 = vrot.lane.b32.xlu0 %v33, 84
    %v42 = vpop.permute.xlu0 %41
    %vm43 = vcmask 687104
    %v44 = vsel %vm43, %v38, %v40
    %v45 = vsel %vm43, %v40, %v42
    %49 = vst [vmem:[#allocation6] sm:$0xff] %v44
    %50 = vst [vmem:[#allocation6 + $0x8] sm:$0xff] %v45
    %51 = vst.msk [vmem:[#allocation6 + $0x10] sm:$0xff] %vm29, %v42
    // Predicated region
    $region10: #{tpu_custom_call.1} parent=1 // pred_check
      _
    $region11: #{tpu_custom_call.1} parent=1 // pred_check_branch
      %53 = sbr.rel (0) target = $region13
    $region12: #{tpu_custom_call.1} parent=1 // pred_region
      %s55 = ssub.s32 384, 384
      %56 = vsyncadd [#allocation4], %s55
      %s58 = sshll.u32 [#allocation5], 4
      %s59 = int_to_ptr.vmem [resolvable:$true] %s58
      %61 = dma.vmem_to_hbm [thread:$0]  %s59, 384, %s1, [#allocation4]
    $region13: #{tpu_custom_call.1} parent=1 // pred_fallthru
      _
    // Predicated region
    $region14: #{tpu_custom_call.1} parent=1 // pred_check
      _
    $region15: #{tpu_custom_call.1} parent=1 // pred_check_branch
      %63 = sbr.rel (0) target = $region17
    $region16: #{tpu_custom_call.1} parent=1 // pred_region
      %s65 = ssub.s32 384, 384
      %66 = vsyncadd [#allocation7], %s65
      %s68 = sshll.u32 [#allocation6], 4
      %s69 = int_to_ptr.vmem [resolvable:$true] %s68
      %71 = dma.vmem_to_hbm [thread:$0]  %s69, 384, %s2, [#allocation7]
    $region17: #{tpu_custom_call.1} parent=1 // pred_fallthru
      _
    // Predicated region
    $region18: #{tpu_custom_call.1} parent=1 // pred_check
      _
    $region19: #{tpu_custom_call.1} parent=1 // pred_check_branch
      %73 = sbr.rel (0) target = $region21
    $region20: #{tpu_custom_call.1} parent=1 // pred_region
      %74 = dma.done [#allocation4], 384
    $region21: #{tpu_custom_call.1} parent=1 // pred_fallthru
      _
    // Predicated region
    $region22: #{tpu_custom_call.1} parent=1 // pred_check
      _
    $region23: #{tpu_custom_call.1} parent=1 // pred_check_branch
      %76 = sbr.rel (0) target = $region25
    $region24: #{tpu_custom_call.1} parent=1 // pred_region
      %77 = dma.done [#allocation7], 384
    $region25: #{tpu_custom_call.1} parent=1 // pred_fallthru
      _
    %78 = vsyncpa [#allocation3], 1
    %79 = vsyncpa [#allocation4], 1
    %80 = vsyncpa [#allocation7], 1

</llo_original>
